<compile_context>
chip_gen: v7x
topology: tpu7x:2x2x1
jax: 0.10.0
libtpu: 0.0.40
codegen_flags: <defaults>
</compile_context>

<pallas_src>
import jax
import jax.numpy as jnp
from jax.experimental import pallas as pl
from jax.experimental.pallas import tpu as pltpu


def _relu(x):
    return jnp.maximum(x, 0.0)


def _make_critic_kernel(num_inputs, num_linear, activation, last_activation):
    """refs = (x_1..x_m, W1_1..W1_m, b1, W2, b2, ..., WL, bL, out)."""

    def kernel(*refs):
        xs = refs[:num_inputs]
        o_ref = refs[-1]
        wb = refs[num_inputs:-1]
        w1_parts = wb[:num_inputs]
        rest = wb[num_inputs:]          # b1, W2, b2, ..., WL, bL

        # Layer 1: sum of partial matmuls over the (un-concatenated) inputs.
        acc = None
        for j in range(num_inputs):
            part = jnp.dot(xs[j][...].astype(jnp.float32),
                           w1_parts[j][...].astype(jnp.float32),
                           preferred_element_type=jnp.float32)
            acc = part if acc is None else acc + part
        h = acc + rest[0][...].astype(jnp.float32)
        if num_linear > 1:
            h = activation(h)
        elif last_activation is not None:
            h = last_activation(h)

        # Remaining layers.
        for i in range(1, num_linear):
            w = rest[2 * i - 1][...].astype(jnp.float32)
            b = rest[2 * i][...].astype(jnp.float32)
            h = jnp.dot(h, w, preferred_element_type=jnp.float32) + b
            if i < num_linear - 1:
                h = activation(h)
            elif last_activation is not None:
                h = last_activation(h)

        o_ref[...] = h.astype(o_ref.dtype)

    return kernel


def init_critic_params(key, layer_num, input_dim, output_dim, hidden_dim):
    """Orthogonal weights, zero biases (matches Network.network_init)."""
    dims = [input_dim] + [hidden_dim] * (layer_num - 1) + [output_dim]
    ortho = jax.nn.initializers.orthogonal()
    weights, biases = [], []
    for i in range(len(dims) - 1):
        key, sub = jax.random.split(key)
        # torch nn.Linear weight is (out, in); orthogonal_ acts on that and
        # forward does x @ W.T, so store the transpose (in, out) here.
        w_t = ortho(sub, (dims[i + 1], dims[i]), jnp.float32)
        weights.append(w_t.T)
        biases.append(jnp.zeros((dims[i + 1],), jnp.float32))
    return {"weights": weights, "biases": biases}


def critic_reference(params, *xs, activation=_relu, last_activation=None):
    """Pure-JAX reference for correctness checking."""
    x = jnp.concatenate(xs, axis=-1) if len(xs) > 1 else xs[0]
    n = len(params["weights"])
    for i, (w, b) in enumerate(zip(params["weights"], params["biases"])):
        x = x @ w + b
        if i < n - 1:
            x = activation(x)
        elif last_activation is not None:
            x = last_activation(x)
    return x


def critic_forward(params, *xs, activation=_relu, last_activation=None,
                   block_rows=1024):
    """Pallas implementation of Critic.forward(*x)."""
    weights = params["weights"]   # list of (in, out) f32 arrays
    biases = params["biases"]     # list of (out,)   f32 arrays
    num_linear = len(weights)
    num_inputs = len(xs)
    out_dim = weights[-1].shape[1]
    out_dtype = jnp.result_type(*xs)

    batch = xs[0].shape[0]
    in_dims = [int(x.shape[-1]) for x in xs]
    assert sum(in_dims) == weights[0].shape[0], "input dims must match W1 rows"

    # --- row tile: multiple of 8, big enough to amortize per-step overhead,
    # --- capped so large batches keep >=4 grid steps (v7x: 2 TCs x >=2 steps).
    b8 = ((batch + 7) // 8) * 8
    tb = min(block_rows, b8)
    if b8 >= 4 * 128:
        tb = min(tb, max((b8 // 4) // 8 * 8, 128))
    tb = max(8, (tb // 8) * 8)
    b_pad = ((batch + tb - 1) // tb) * tb
    grid = (b_pad // tb,)

    # --- inputs: only pad rows (to a multiple of tb), keep dtype and last dim.
    def pad_rows(a):
        p = b_pad - a.shape[0]
        return jnp.pad(a, [(0, p), (0, 0)]) if p else a

    xs_p = [pad_rows(x) for x in xs]

    # --- split W1 row-wise to match the un-concatenated inputs (tiny slices).
    w1 = weights[0]
    w1_parts, off = [], 0
    for d in in_dims:
        w1_parts.append(w1[off:off + d])
        off += d

    wb_args = list(w1_parts) + [biases[0].reshape(1, -1)]
    for w, b in zip(weights[1:], biases[1:]):
        wb_args.append(w)
        wb_args.append(b.reshape(1, -1))

    # --- specs: activations tiled over rows; weights/biases resident blocks.
    in_specs = [pl.BlockSpec((tb, d), lambda i: (i, 0)) for d in in_dims]
    for a in wb_args:
        in_specs.append(pl.BlockSpec(a.shape, lambda i: (0, 0)))
    out_specs = pl.BlockSpec((tb, out_dim), lambda i: (i, 0))

    # --- honest cost estimate (true, unpadded sizes).
    flops = 2 * batch * sum(int(w.shape[0]) * int(w.shape[1]) for w in weights)
    bytes_accessed = (
        sum(int(x.size) * x.dtype.itemsize for x in xs)
        + sum(int(w.size) * 4 for w in weights)
        + sum(int(b.size) * 4 for b in biases)
        + batch * out_dim * jnp.dtype(out_dtype).itemsize
    )

    kernel = _make_critic_kernel(num_inputs, num_linear, activation,
                                 last_activation)

    out_p = pl.pallas_call(
        kernel,
        out_shape=jax.ShapeDtypeStruct((b_pad, out_dim), out_dtype),
        grid_spec=pl.GridSpec(
            grid=grid,
            in_specs=in_specs,
            out_specs=out_specs,
        ),
        compiler_params=pltpu.CompilerParams(
            dimension_semantics=("parallel",),
        ),
        cost_estimate=pl.CostEstimate(
            flops=flops, transcendentals=0, bytes_accessed=bytes_accessed),
    )(*xs_p, *wb_args)

    # Strip batch padding only (no feature padding was introduced).
    return out_p[:batch]


if __name__ == "__main__":
    key = jax.random.PRNGKey(0)

    # Critic(layer_num=3, input_dim=state+action, output_dim=1, hidden_dim=32,
    #        activation_function=relu, last_activation=None)
    layer_num, state_dim, action_dim, hidden_dim, output_dim = 3, 24, 8, 32, 1
    batch = 8

    k_params, k_s, k_a = jax.random.split(key, 3)
    params = init_critic_params(
        k_params, layer_num, state_dim + action_dim, output_dim, hidden_dim)
    state = jax.random.normal(k_s, (batch, state_dim), dtype=jnp.float32)
    action = jax.random.normal(k_a, (batch, action_dim), dtype=jnp.float32)

    y = critic_forward(params, state, action)
    jax.block_until_ready(y)

    y_ref = critic_reference(params, state, action)
    assert y.shape == (batch, output_dim) and y.dtype == state.dtype
    assert bool(jnp.allclose(y, y_ref, atol=1e-4, rtol=1e-4))

    print("KERNEL_OK")
</pallas_src>

<mosaic_0001>
module attributes {stable_mosaic.version = 11 : i64} {
  func.func @kernel(%arg0: i32, %arg1: memref<8x24xf32, #tpu.memory_space<vmem>>, %arg2: memref<8x8xf32, #tpu.memory_space<vmem>>, %arg3: memref<24x32xf32, #tpu.memory_space<vmem>>, %arg4: memref<8x32xf32, #tpu.memory_space<vmem>>, %arg5: memref<1x32xf32, #tpu.memory_space<vmem>>, %arg6: memref<32x32xf32, #tpu.memory_space<vmem>>, %arg7: memref<1x32xf32, #tpu.memory_space<vmem>>, %arg8: memref<32x1xf32, #tpu.memory_space<vmem>>, %arg9: memref<1x1xf32, #tpu.memory_space<vmem>>, %arg10: memref<8x1xf32, #tpu.memory_space<vmem>>) attributes {dimension_semantics = [#tpu.dimension_semantics<parallel>], iteration_bounds = array<i64: 1>, scalar_prefetch = 0 : i64, scratch_operands = 0 : i64, tpu.core_type = #tpu.core_type<tc>, window_params = [{transform_indices = @transform_0, window_bounds = array<i64: 8, 24>}, {transform_indices = @transform_1, window_bounds = array<i64: 8, 8>}, {pipeline_mode = #tpu.pipeline_mode<synchronous>, transform_indices = @transform_2, window_bounds = array<i64: 24, 32>}, {pipeline_mode = #tpu.pipeline_mode<synchronous>, transform_indices = @transform_3, window_bounds = array<i64: 8, 32>}, {pipeline_mode = #tpu.pipeline_mode<synchronous>, transform_indices = @transform_4, window_bounds = array<i64: 1, 32>}, {pipeline_mode = #tpu.pipeline_mode<synchronous>, transform_indices = @transform_5, window_bounds = array<i64: 32, 32>}, {pipeline_mode = #tpu.pipeline_mode<synchronous>, transform_indices = @transform_6, window_bounds = array<i64: 1, 32>}, {pipeline_mode = #tpu.pipeline_mode<synchronous>, transform_indices = @transform_7, window_bounds = array<i64: 32, 1>}, {pipeline_mode = #tpu.pipeline_mode<synchronous>, transform_indices = @transform_8, window_bounds = array<i64: 1, 1>}, {transform_indices = @transform_9, window_bounds = array<i64: 8, 1>}]} {
    %c0 = arith.constant 0 : index
    %c0_0 = arith.constant 0 : index
    %0 = vector.load %arg1[%c0, %c0_0] : memref<8x24xf32, #tpu.memory_space<vmem>>, vector<8x24xf32>
    %c0_1 = arith.constant 0 : index
    %c0_2 = arith.constant 0 : index
    %1 = vector.load %arg3[%c0_1, %c0_2] : memref<24x32xf32, #tpu.memory_space<vmem>>, vector<24x32xf32>
    %cst = arith.constant dense<0.000000e+00> : vector<8x32xf32>
    %2 = tpu.matmul %0, %1, %cst {dimension_numbers = #tpu.dot_dimension_numbers<[1], [0], [0], [1], [0, 0, 1, 1], [], []>} : vector<8x24xf32>, vector<24x32xf32>, vector<8x32xf32> -> vector<8x32xf32>
    %c0_3 = arith.constant 0 : index
    %c0_4 = arith.constant 0 : index
    %3 = vector.load %arg2[%c0_3, %c0_4] : memref<8x8xf32, #tpu.memory_space<vmem>>, vector<8x8xf32>
    %c0_5 = arith.constant 0 : index
    %c0_6 = arith.constant 0 : index
    %4 = vector.load %arg4[%c0_5, %c0_6] : memref<8x32xf32, #tpu.memory_space<vmem>>, vector<8x32xf32>
    %cst_7 = arith.constant dense<0.000000e+00> : vector<8x32xf32>
    %5 = tpu.matmul %3, %4, %cst_7 {dimension_numbers = #tpu.dot_dimension_numbers<[1], [0], [0], [1], [0, 0, 1, 1], [], []>} : vector<8x8xf32>, vector<8x32xf32>, vector<8x32xf32> -> vector<8x32xf32>
    %6 = arith.addf %2, %5 : vector<8x32xf32>
    %c0_8 = arith.constant 0 : index
    %c0_9 = arith.constant 0 : index
    %7 = vector.load %arg5[%c0_8, %c0_9] : memref<1x32xf32, #tpu.memory_space<vmem>>, vector<1x32xf32>
    %8 = vector.broadcast %7 : vector<1x32xf32> to vector<8x32xf32>
    %9 = arith.addf %6, %8 : vector<8x32xf32>
    %cst_10 = arith.constant 0.000000e+00 : f32
    %10 = vector.broadcast %cst_10 : f32 to vector<8x32xf32>
    %11 = arith.maximumf %9, %10 : vector<8x32xf32>
    %c0_11 = arith.constant 0 : index
    %c0_12 = arith.constant 0 : index
    %12 = vector.load %arg6[%c0_11, %c0_12] : memref<32x32xf32, #tpu.memory_space<vmem>>, vector<32x32xf32>
    %c0_13 = arith.constant 0 : index
    %c0_14 = arith.constant 0 : index
    %13 = vector.load %arg7[%c0_13, %c0_14] : memref<1x32xf32, #tpu.memory_space<vmem>>, vector<1x32xf32>
    %cst_15 = arith.constant dense<0.000000e+00> : vector<8x32xf32>
    %14 = tpu.matmul %11, %12, %cst_15 {dimension_numbers = #tpu.dot_dimension_numbers<[1], [0], [0], [1], [0, 0, 1, 1], [], []>} : vector<8x32xf32>, vector<32x32xf32>, vector<8x32xf32> -> vector<8x32xf32>
    %15 = vector.broadcast %13 : vector<1x32xf32> to vector<8x32xf32>
    %16 = arith.addf %14, %15 : vector<8x32xf32>
    %cst_16 = arith.constant 0.000000e+00 : f32
    %17 = vector.broadcast %cst_16 : f32 to vector<8x32xf32>
    %18 = arith.maximumf %16, %17 : vector<8x32xf32>
    %c0_17 = arith.constant 0 : index
    %c0_18 = arith.constant 0 : index
    %19 = vector.load %arg8[%c0_17, %c0_18] : memref<32x1xf32, #tpu.memory_space<vmem>>, vector<32x1xf32>
    %c0_19 = arith.constant 0 : index
    %c0_20 = arith.constant 0 : index
    %20 = vector.load %arg9[%c0_19, %c0_20] : memref<1x1xf32, #tpu.memory_space<vmem>>, vector<1x1xf32>
    %cst_21 = arith.constant dense<0.000000e+00> : vector<8x1xf32>
    %21 = tpu.matmul %18, %19, %cst_21 {dimension_numbers = #tpu.dot_dimension_numbers<[1], [0], [0], [1], [0, 0, 1, 1], [], []>} : vector<8x32xf32>, vector<32x1xf32>, vector<8x1xf32> -> vector<8x1xf32>
    %22 = vector.broadcast %20 : vector<1x1xf32> to vector<8x1xf32>
    %23 = arith.addf %21, %22 : vector<8x1xf32>
    %c0_22 = arith.constant 0 : index
    %c0_23 = arith.constant 0 : index
    %24 = vector.load %arg10[%c0_22, %c0_23] : memref<8x1xf32, #tpu.memory_space<vmem>>, vector<8x1xf32>
    tpu.vector_store %arg10[%c0_22, %c0_23], %23 {strides = array<i32>} : memref<8x1xf32, #tpu.memory_space<vmem>>, vector<8x1xf32>,
    return
  }
  func.func @transform_0(%arg0: i32) -> (i32, i32) {
    %c0_i32 = arith.constant 0 : i32
    %c0_i32_0 = arith.constant 0 : i32
    return %arg0, %c0_i32 : i32, i32
  }
  func.func @transform_1(%arg0: i32) -> (i32, i32) {
    %c0_i32 = arith.constant 0 : i32
    %c0_i32_0 = arith.constant 0 : i32
    return %arg0, %c0_i32 : i32, i32
  }
  func.func @transform_2(%arg0: i32) -> (i32, i32) {
    %c0_i32 = arith.constant 0 : i32
    %c0_i32_0 = arith.constant 0 : i32
    %c0_i32_1 = arith.constant 0 : i32
    return %c0_i32, %c0_i32_0 : i32, i32
  }
  func.func @transform_3(%arg0: i32) -> (i32, i32) {
    %c0_i32 = arith.constant 0 : i32
    %c0_i32_0 = arith.constant 0 : i32
    %c0_i32_1 = arith.constant 0 : i32
    return %c0_i32, %c0_i32_0 : i32, i32
  }
  func.func @transform_4(%arg0: i32) -> (i32, i32) {
    %c0_i32 = arith.constant 0 : i32
    %c0_i32_0 = arith.constant 0 : i32
    %c0_i32_1 = arith.constant 0 : i32
    return %c0_i32, %c0_i32_0 : i32, i32
  }
  func.func @transform_5(%arg0: i32) -> (i32, i32) {
    %c0_i32 = arith.constant 0 : i32
    %c0_i32_0 = arith.constant 0 : i32
    %c0_i32_1 = arith.constant 0 : i32
    return %c0_i32, %c0_i32_0 : i32, i32
  }
  func.func @transform_6(%arg0: i32) -> (i32, i32) {
    %c0_i32 = arith.constant 0 : i32
    %c0_i32_0 = arith.constant 0 : i32
    %c0_i32_1 = arith.constant 0 : i32
    return %c0_i32, %c0_i32_0 : i32, i32
  }
  func.func @transform_7(%arg0: i32) -> (i32, i32) {
    %c0_i32 = arith.constant 0 : i32
    %c0_i32_0 = arith.constant 0 : i32
    %c0_i32_1 = arith.constant 0 : i32
    return %c0_i32, %c0_i32_0 : i32, i32
  }
  func.func @transform_8(%arg0: i32) -> (i32, i32) {
    %c0_i32 = arith.constant 0 : i32
    %c0_i32_0 = arith.constant 0 : i32
    %c0_i32_1 = arith.constant 0 : i32
    return %c0_i32, %c0_i32_0 : i32, i32
  }
  func.func @transform_9(%arg0: i32) -> (i32, i32) {
    %c0_i32 = arith.constant 0 : i32
    %c0_i32_0 = arith.constant 0 : i32
    return %arg0, %c0_i32 : i32, i32
  }
}

</mosaic_0001>

<llo_original>
// kernel: tpu_custom_call.1
$region0: #{tpu_custom_call.1}
  #allocation0 [shape = 'u32[]', space=smem, size = 0x4, offset = 0x4, fixed_abs, tag = 'smem constant byte address 0x4 - core index']
  #allocation1 [shape = 'u32[144,128]{1,0:T(1,128)}', space=vmem, size = 0x12000, scoped, tag = 'internal scratch']
  #allocation2 [shape = 'f32[1,1]{1,0:T(1,128)S(1)}', space=vmem, size = 0x200, scoped, tag = 'scoped memory for tpu_custom_call.1']
  %s0 = inlined_call_operand.vmem [shape: f32[8,24], index: 0, kind: input, shape index: {}]
  %s1 = inlined_call_operand.vmem [shape: f32[8,8], index: 1, kind: input, shape index: {}]
  %s2 = inlined_call_operand.hbm [shape: f32[24,32], index: 2, kind: input, shape index: {}]
  %s3 = inlined_call_operand.hbm [shape: f32[8,32], index: 3, kind: input, shape index: {}]
  %s4 = inlined_call_operand.vmem [shape: f32[1,32], index: 4, kind: input, shape index: {}]
  %s5 = inlined_call_operand.vmem [shape: f32[32,32], index: 5, kind: input, shape index: {}]
  %s6 = inlined_call_operand.vmem [shape: f32[1,32], index: 6, kind: input, shape index: {}]
  %s7 = inlined_call_operand.vmem [shape: f32[32,1], index: 7, kind: input, shape index: {}]
  %s8 = inlined_call_operand.<no memory space> [shape: f32[1,1], index: 8, kind: input, shape index: {}]
  %s9 = inlined_call_operand.vmem [shape: f32[8,1], index: 9, kind: output, shape index: {}]
  %s10 = sld [smem:[#allocation0]]
  $region54: #{tpu_custom_call.1} parent=0
    _
  %s12 = ssub.s32 1, %s10
  %s13 = scalar_select 0, %s12, %s10
  %v14 = vstv %s8
  %15 = vst [vmem:[#allocation2] sm:$0x1] %v14
  $region1: #{tpu_custom_call.1} parent=0
    #allocation3 [shape = 'u8[12288]{0}', space=vmem, size = 0x3000, scoped, tag = 'input window, operand 2, single buffered']
    #allocation4 [shape = 's32[1]{0}', space=sflag, size = 0x4, scoped, tag = 'scoped memory for tpu_custom_call.1']
    #allocation5 [shape = 'u8[4096]{0}', space=vmem, size = 0x1000, scoped, tag = 'input window, operand 3, single buffered']
    #allocation6 [shape = 's32[1]{0}', space=sflag, size = 0x4, scoped, tag = 'scoped memory for tpu_custom_call.1']
    %16 = vsyncpa [#allocation4], 0
    %17 = vsyncpa [#allocation6], 0
    // Predicated region
    $region2: #{tpu_custom_call.1} parent=1 // pred_check
      _
    $region3: #{tpu_custom_call.1} parent=1 // pred_check_branch
      %19 = sbr.rel (0) target = $region5
    $region4: #{tpu_custom_call.1} parent=1 // pred_region
      _
    $region5: #{tpu_custom_call.1} parent=1 // pred_fallthru
      _
    // Predicated region
    $region6: #{tpu_custom_call.1} parent=1 // pred_check
      _
    $region7: #{tpu_custom_call.1} parent=1 // pred_check_branch
      %21 = sbr.rel (0) target = $region9
    $region8: #{tpu_custom_call.1} parent=1 // pred_region
      _
    $region9: #{tpu_custom_call.1} parent=1 // pred_fallthru
      _
    // Predicated region
    $region10: #{tpu_custom_call.1} parent=1 // pred_check
      _
    $region11: #{tpu_custom_call.1} parent=1 // pred_check_branch
      %23 = sbr.rel (0) target = $region13
    $region12: #{tpu_custom_call.1} parent=1 // pred_region
      %s25 = ssub.s32 384, 384
      %26 = vsyncadd [#allocation4], %s25
      %s27 = sshll.u32 [#allocation3], 4
      %s28 = int_to_ptr.vmem [resolvable:$true] %s27
      %33 = dma.hbm_to_vmem [thread:$0]  %s2, 384, %s28, [#allocation4], 128, 128, 8
    $region13: #{tpu_custom_call.1} parent=1 // pred_fallthru
      _
    // Predicated region
    $region14: #{tpu_custom_call.1} parent=1 // pred_check
      _
    $region15: #{tpu_custom_call.1} parent=1 // pred_check_branch
      %35 = sbr.rel (0) target = $region17
    $region16: #{tpu_custom_call.1} parent=1 // pred_region
      %s37 = ssub.s32 128, 128
      %38 = vsyncadd [#allocation6], %s37
      %s40 = sshll.u32 [#allocation5], 4
      %s41 = int_to_ptr.vmem [resolvable:$true] %s40
      %43 = dma.hbm_to_vmem [thread:$0]  %s3, 128, %s41, [#allocation6]
    $region17: #{tpu_custom_call.1} parent=1 // pred_fallthru
      _
    // Predicated region
    $region18: #{tpu_custom_call.1} parent=1 // pred_check
      _
    $region19: #{tpu_custom_call.1} parent=1 // pred_check_branch
      %45 = sbr.rel (0) target = $region21
    $region20: #{tpu_custom_call.1} parent=1 // pred_region
      _
    $region21: #{tpu_custom_call.1} parent=1 // pred_fallthru
      _
    // Predicated region
    $region22: #{tpu_custom_call.1} parent=1 // pred_check
      _
    $region23: #{tpu_custom_call.1} parent=1 // pred_check_branch
      %47 = sbr.rel (0) target = $region25
    $region24: #{tpu_custom_call.1} parent=1 // pred_region
      _
    $region25: #{tpu_custom_call.1} parent=1 // pred_fallthru
      _
    // Predicated region
    $region26: #{tpu_custom_call.1} parent=1 // pred_check
      _
    $region27: #{tpu_custom_call.1} parent=1 // pred_check_branch
      %49 = sbr.rel (0) target = $region29
    $region28: #{tpu_custom_call.1} parent=1 // pred_region
      _
    $region29: #{tpu_custom_call.1} parent=1 // pred_fallthru
      _
    // Predicated region
    $region30: #{tpu_custom_call.1} parent=1 // pred_check
      _
    $region31: #{tpu_custom_call.1} parent=1 // pred_check_branch
      %51 = sbr.rel (0) target = $region33
    $region32: #{tpu_custom_call.1} parent=1 // pred_region
      _
    $region33: #{tpu_custom_call.1} parent=1 // pred_fallthru
      _
    // Predicated region
    $region34: #{tpu_custom_call.1} parent=1 // pred_check
      _
    $region35: #{tpu_custom_call.1} parent=1 // pred_check_branch
      %53 = sbr.rel (0) target = $region37
    $region36: #{tpu_custom_call.1} parent=1 // pred_region
      _
    $region37: #{tpu_custom_call.1} parent=1 // pred_fallthru
      _
    // Predicated region
    $region38: #{tpu_custom_call.1} parent=1 // pred_check
      _
    $region39: #{tpu_custom_call.1} parent=1 // pred_check_branch
      %55 = sbr.rel (0) target = $region41
    $region40: #{tpu_custom_call.1} parent=1 // pred_region
      %56 = dma.done [#allocation4], 384
    $region41: #{tpu_custom_call.1} parent=1 // pred_fallthru
      _
    // Predicated region
    $region42: #{tpu_custom_call.1} parent=1 // pred_check
      _
    $region43: #{tpu_custom_call.1} parent=1 // pred_check_branch
      %58 = sbr.rel (0) target = $region45
    $region44: #{tpu_custom_call.1} parent=1 // pred_region
      %59 = dma.done [#allocation6], 128
    $region45: #{tpu_custom_call.1} parent=1 // pred_fallthru
      _
    %v60 = vld [vmem:[%s0] sm:$0xff]
    %v61 = vld [vmem:[#allocation3] sm:$0xff]
    %v62 = vld [vmem:[#allocation3 + $0x8] sm:$0xff]
    %v63 = vld [vmem:[#allocation3 + $0x10] sm:$0xff]
    %v64 = vld [vmem:[%s1] sm:$0xff]
    %v65 = vld [vmem:[#allocation5] sm:$0xff]
    %vm66 = vcmask 64512
    %v68 = vsel %vm66, %v64, 0
    %70 = vmatprep.subr.mxu0 0.0
    %71 = vmatpush1.msra.mxu0 %v65
    %72 = vmatprep.subr.mxu0 0.0
    %73 = vmatpush1.msra.mxu0 0.0
    %74 = vmatprep.subr.mxu0 0.0
    %75 = vmatpush1.msra.mxu0 0.0
    %76 = vmatprep.subr.mxu0 0.0
    %77 = vmatpush1.msra.mxu0 0.0
    %78 = vmatprep.subr.mxu0 0.0
    %79 = vmatpush1.msra.mxu0 0.0
    %80 = vmatprep.subr.mxu0 0.0
    %81 = vmatpush1.msra.mxu0 0.0
    %82 = vmatprep.subr.mxu0 0.0
    %83 = vmatpush1.msra.mxu0 0.0
    %84 = vmatprep.subr.mxu0 0.0
    %85 = vmatpush1.msra.mxu0 0.0
    %86 = vmatprep.subr.mxu0 0.0
    %87 = vmatpush1.msra.mxu0 0.0
    %88 = vmatprep.subr.mxu0 0.0
    %89 = vmatpush1.msra.mxu0 0.0
    %90 = vmatprep.subr.mxu0 0.0
    %91 = vmatpush1.msra.mxu0 0.0
    %92 = vmatprep.subr.mxu0 0.0
    %93 = vmatpush1.msra.mxu0 0.0
    %94 = vmatprep.subr.mxu0 0.0
    %95 = vmatpush1.msra.mxu0 0.0
    %96 = vmatprep.subr.mxu0 0.0
    %97 = vmatpush1.msra.mxu0 0.0
    %98 = vmatprep.subr.mxu0 0.0
    %99 = vmatpush1.msra.mxu0 0.0
    %100 = vmatprep.subr.mxu0 0.0
    %101 = vmatpush1.msra.mxu0 0.0
    %102 = vmatprep.subr.mxu0 0.0
    %103 = vmatpush1.msra.mxu0 0.0
    %104 = vmatprep.subr.mxu0 0.0
    %105 = vmatpush1.msra.mxu0 0.0
    %106 = vmatprep.subr.mxu0 0.0
    %107 = vmatpush1.msra.mxu0 0.0
    %108 = vmatprep.subr.mxu0 0.0
    %109 = vmatpush1.msra.mxu0 0.0
    %110 = vmatprep.subr.mxu0 0.0
    %111 = vmatpush1.msra.mxu0 0.0
    %112 = vmatprep.subr.mxu0 0.0
    %113 = vmatpush1.msra.mxu0 0.0
    %114 = vmatprep.subr.mxu0 0.0
    %115 = vmatpush1.msra.mxu0 0.0
    %116 = vmatprep.subr.mxu0 0.0
    %117 = vmatpush1.msra.mxu0 0.0
    %118 = vmatprep.subr.mxu0 0.0
    %119 = vmatpush1.msra.mxu0 0.0
    %120 = vmatprep.subr.mxu0 0.0
    %121 = vmatpush1.msra.mxu0 0.0
    %122 = vmatprep.subr.mxu0 0.0
    %123 = vmatpush1.msra.mxu0 0.0
    %124 = vmatprep.subr.mxu0 0.0
    %125 = vmatpush1.msra.mxu0 0.0
    %126 = vmatprep.subr.mxu0 0.0
    %127 = vmatpush1.msra.mxu0 0.0
    %128 = vmatprep.subr.mxu0 0.0
    %129 = vmatpush1.msra.mxu0 0.0
    %130 = vmatprep.subr.mxu0 0.0
    %131 = vmatpush1.msra.mxu0 0.0
    %132 = vmatprep.subr.mxu0 0.0
    %133 = vmatpush1.msra.mxu0 0.0
    %134 = vmatprep.mubr.f32.mxu0 0.0
    %135 = vmatmul.mubr.f32.gmra.mrb[0].mxu0 %v68
    %v136 = vpop.f32.mrb[0].mxu0
    %v137 = vadd.f32 0.0, %v136
    %v138 = vpop.f32.mrb[0].mxu0
    %139 = vdwg.mxu0
    %vm140 = vcmask 195584
    %v142 = vsel %vm140, %v60, 0
    %144 = vmatprep.subr.mxu0 0.0
    %145 = vmatpush1.msra.mxu0 %v61
    %146 = vmatprep.subr.mxu0 0.0
    %147 = vmatpush1.msra.mxu0 %v62
    %148 = vmatprep.subr.mxu0 0.0
    %149 = vmatpush1.msra.mxu0 %v63
    %150 = vmatprep.subr.mxu0 0.0
    %151 = vmatpush1.msra.mxu0 0.0
    %152 = vmatprep.subr.mxu0 0.0
    %153 = vmatpush1.msra.mxu0 0.0
    %154 = vmatprep.subr.mxu0 0.0
    %155 = vmatpush1.msra.mxu0 0.0
    %156 = vmatprep.subr.mxu0 0.0
    %157 = vmatpush1.msra.mxu0 0.0
    %158 = vmatprep.subr.mxu0 0.0
    %159 = vmatpush1.msra.mxu0 0.0
    %160 = vmatprep.subr.mxu0 0.0
    %161 = vmatpush1.msra.mxu0 0.0
    %162 = vmatprep.subr.mxu0 0.0
    %163 = vmatpush1.msra.mxu0 0.0
    %164 = vmatprep.subr.mxu0 0.0
    %165 = vmatpush1.msra.mxu0 0.0
    %166 = vmatprep.subr.mxu0 0.0
    %167 = vmatpush1.msra.mxu0 0.0
    %168 = vmatprep.subr.mxu0 0.0
    %169 = vmatpush1.msra.mxu0 0.0
    %170 = vmatprep.subr.mxu0 0.0
    %171 = vmatpush1.msra.mxu0 0.0
    %172 = vmatprep.subr.mxu0 0.0
    %173 = vmatpush1.msra.mxu0 0.0
    %174 = vmatprep.subr.mxu0 0.0
    %175 = vmatpush1.msra.mxu0 0.0
    %176 = vmatprep.subr.mxu0 0.0
    %177 = vmatpush1.msra.mxu0 0.0
    %178 = vmatprep.subr.mxu0 0.0
    %179 = vmatpush1.msra.mxu0 0.0
    %180 = vmatprep.subr.mxu0 0.0
    %181 = vmatpush1.msra.mxu0 0.0
    %182 = vmatprep.subr.mxu0 0.0
    %183 = vmatpush1.msra.mxu0 0.0
    %184 = vmatprep.subr.mxu0 0.0
    %185 = vmatpush1.msra.mxu0 0.0
    %186 = vmatprep.subr.mxu0 0.0
    %187 = vmatpush1.msra.mxu0 0.0
    %188 = vmatprep.subr.mxu0 0.0
    %189 = vmatpush1.msra.mxu0 0.0
    %190 = vmatprep.subr.mxu0 0.0
    %191 = vmatpush1.msra.mxu0 0.0
    %192 = vmatprep.subr.mxu0 0.0
    %193 = vmatpush1.msra.mxu0 0.0
    %194 = vmatprep.subr.mxu0 0.0
    %195 = vmatpush1.msra.mxu0 0.0
    %196 = vmatprep.subr.mxu0 0.0
    %197 = vmatpush1.msra.mxu0 0.0
    %198 = vmatprep.subr.mxu0 0.0
    %199 = vmatpush1.msra.mxu0 0.0
    %200 = vmatprep.subr.mxu0 0.0
    %201 = vmatpush1.msra.mxu0 0.0
    %202 = vmatprep.subr.mxu0 0.0
    %203 = vmatpush1.msra.mxu0 0.0
    %204 = vmatprep.subr.mxu0 0.0
    %205 = vmatpush1.msra.mxu0 0.0
    %206 = vmatprep.subr.mxu0 0.0
    %207 = vmatpush1.msra.mxu0 0.0
    %208 = vmatprep.mubr.f32.mxu0 0.0
    %209 = vmatmul.mubr.f32.gmra.mrb[0].mxu0 %v142
    %v210 = vpop.f32.mrb[0].mxu0
    %v211 = vadd.f32 %v137, %v210
    %v212 = vpop.f32.mrb[0].mxu0
    %213 = vdwg.mxu0
    %v214 = vld [vmem:[%s4] sm:$0x1]
    %v216 = vlaneseq
    %v217 = vshrl.u32 %v216, 7
    %v218 = vsub.s32 0, %v217
    %v219 = vrot.slane %v214, %v218
    %v221 = vadd.f32 %v211, %v219
    %v222 = vmax.f32 %v221, 0.0
    %v223 = vld [vmem:[%s5] sm:$0xff]
    %v224 = vld [vmem:[%s5 + $0x8] sm:$0xff]
    %v225 = vld [vmem:[%s5 + $0x10] sm:$0xff]
    %v226 = vld [vmem:[%s5 + $0x18] sm:$0xff]
    %v227 = vld [vmem:[%s6] sm:$0x1]
    %v229 = vlaneseq
    %v230 = vshrl.u32 %v229, 7
    %v231 = vsub.s32 0, %v230
    %v232 = vrot.slane %v227, %v231
    %vm234 = vcmask 261120
    %v236 = vsel %vm234, %v222, 0
    %238 = vmatprep.subr.mxu0 0.0
    %239 = vmatpush1.msra.mxu0 %v223
    %240 = vmatprep.subr.mxu0 0.0
    %241 = vmatpush1.msra.mxu0 %v224
    %242 = vmatprep.subr.mxu0 0.0
    %243 = vmatpush1.msra.mxu0 %v225
    %244 = vmatprep.subr.mxu0 0.0
    %245 = vmatpush1.msra.mxu0 %v226
    %246 = vmatprep.subr.mxu0 0.0
    %247 = vmatpush1.msra.mxu0 0.0
    %248 = vmatprep.subr.mxu0 0.0
    %249 = vmatpush1.msra.mxu0 0.0
    %250 = vmatprep.subr.mxu0 0.0
    %251 = vmatpush1.msra.mxu0 0.0
    %252 = vmatprep.subr.mxu0 0.0
    %253 = vmatpush1.msra.mxu0 0.0
    %254 = vmatprep.subr.mxu0 0.0
    %255 = vmatpush1.msra.mxu0 0.0
    %256 = vmatprep.subr.mxu0 0.0
    %257 = vmatpush1.msra.mxu0 0.0
    %258 = vmatprep.subr.mxu0 0.0
    %259 = vmatpush1.msra.mxu0 0.0
    %260 = vmatprep.subr.mxu0 0.0
    %261 = vmatpush1.msra.mxu0 0.0
    %262 = vmatprep.subr.mxu0 0.0
    %263 = vmatpush1.msra.mxu0 0.0
    %264 = vmatprep.subr.mxu0 0.0
    %265 = vmatpush1.msra.mxu0 0.0
    %266 = vmatprep.subr.mxu0 0.0
    %267 = vmatpush1.msra.mxu0 0.0
    %268 = vmatprep.subr.mxu0 0.0
    %269 = vmatpush1.msra.mxu0 0.0
    %270 = vmatprep.subr.mxu0 0.0
    %271 = vmatpush1.msra.mxu0 0.0
    %272 = vmatprep.subr.mxu0 0.0
    %273 = vmatpush1.msra.mxu0 0.0
    %274 = vmatprep.subr.mxu0 0.0
    %275 = vmatpush1.msra.mxu0 0.0
    %276 = vmatprep.subr.mxu0 0.0
    %277 = vmatpush1.msra.mxu0 0.0
    %278 = vmatprep.subr.mxu0 0.0
    %279 = vmatpush1.msra.mxu0 0.0
    %280 = vmatprep.subr.mxu0 0.0
    %281 = vmatpush1.msra.mxu0 0.0
    %282 = vmatprep.subr.mxu0 0.0
    %283 = vmatpush1.msra.mxu0 0.0
    %284 = vmatprep.subr.mxu0 0.0
    %285 = vmatpush1.msra.mxu0 0.0
    %286 = vmatprep.subr.mxu0 0.0
    %287 = vmatpush1.msra.mxu0 0.0
    %288 = vmatprep.subr.mxu0 0.0
    %289 = vmatpush1.msra.mxu0 0.0
    %290 = vmatprep.subr.mxu0 0.0
    %291 = vmatpush1.msra.mxu0 0.0
    %292 = vmatprep.subr.mxu0 0.0
    %293 = vmatpush1.msra.mxu0 0.0
    %294 = vmatprep.subr.mxu0 0.0
    %295 = vmatpush1.msra.mxu0 0.0
    %296 = vmatprep.subr.mxu0 0.0
    %297 = vmatpush1.msra.mxu0 0.0
    %298 = vmatprep.subr.mxu0 0.0
    %299 = vmatpush1.msra.mxu0 0.0
    %300 = vmatprep.subr.mxu0 0.0
    %301 = vmatpush1.msra.mxu0 0.0
    %302 = vmatprep.mubr.f32.mxu0 0.0
    %303 = vmatmul.mubr.f32.gmra.mrb[0].mxu0 %v236
    %v304 = vpop.f32.mrb[0].mxu0
    %v305 = vadd.f32 %v232, %v304
    %v306 = vpop.f32.mrb[0].mxu0
    %307 = vdwg.mxu0
    %v308 = vmax.f32 %v305, 0.0
    %v309 = vld [vmem:[%s7] sm:$0xff]
    %v310 = vld [vmem:[%s7 + $0x8] sm:$0xff]
    %v311 = vld [vmem:[%s7 + $0x10] sm:$0xff]
    %v312 = vld [vmem:[%s7 + $0x18] sm:$0xff]
    %v313 = vld [vmem:[#allocation2] sm:$0x1]
    %v315 = vlaneseq
    %v316 = vshrl.u32 %v315, 7
    %v317 = vsub.s32 0, %v316
    %v318 = vrot.slane %v313, %v317
    %v321 = vsel %vm234, %v308, 0
    %323 = vmatprep.subr.mxu0 0.0
    %324 = vmatpush1.msra.mxu0 %v309
    %325 = vmatprep.subr.mxu0 0.0
    %326 = vmatpush1.msra.mxu0 %v310
    %327 = vmatprep.subr.mxu0 0.0
    %328 = vmatpush1.msra.mxu0 %v311
    %329 = vmatprep.subr.mxu0 0.0
    %330 = vmatpush1.msra.mxu0 %v312
    %331 = vmatprep.subr.mxu0 0.0
    %332 = vmatpush1.msra.mxu0 0.0
    %333 = vmatprep.subr.mxu0 0.0
    %334 = vmatpush1.msra.mxu0 0.0
    %335 = vmatprep.subr.mxu0 0.0
    %336 = vmatpush1.msra.mxu0 0.0
    %337 = vmatprep.subr.mxu0 0.0
    %338 = vmatpush1.msra.mxu0 0.0
    %339 = vmatprep.subr.mxu0 0.0
    %340 = vmatpush1.msra.mxu0 0.0
    %341 = vmatprep.subr.mxu0 0.0
    %342 = vmatpush1.msra.mxu0 0.0
    %343 = vmatprep.subr.mxu0 0.0
    %344 = vmatpush1.msra.mxu0 0.0
    %345 = vmatprep.subr.mxu0 0.0
    %346 = vmatpush1.msra.mxu0 0.0
    %347 = vmatprep.subr.mxu0 0.0
    %348 = vmatpush1.msra.mxu0 0.0
    %349 = vmatprep.subr.mxu0 0.0
    %350 = vmatpush1.msra.mxu0 0.0
    %351 = vmatprep.subr.mxu0 0.0
    %352 = vmatpush1.msra.mxu0 0.0
    %353 = vmatprep.subr.mxu0 0.0
    %354 = vmatpush1.msra.mxu0 0.0
    %355 = vmatprep.subr.mxu0 0.0
    %356 = vmatpush1.msra.mxu0 0.0
    %357 = vmatprep.subr.mxu0 0.0
    %358 = vmatpush1.msra.mxu0 0.0
    %359 = vmatprep.subr.mxu0 0.0
    %360 = vmatpush1.msra.mxu0 0.0
    %361 = vmatprep.subr.mxu0 0.0
    %362 = vmatpush1.msra.mxu0 0.0
    %363 = vmatprep.subr.mxu0 0.0
    %364 = vmatpush1.msra.mxu0 0.0
    %365 = vmatprep.subr.mxu0 0.0
    %366 = vmatpush1.msra.mxu0 0.0
    %367 = vmatprep.subr.mxu0 0.0
    %368 = vmatpush1.msra.mxu0 0.0
    %369 = vmatprep.subr.mxu0 0.0
    %370 = vmatpush1.msra.mxu0 0.0
    %371 = vmatprep.subr.mxu0 0.0
    %372 = vmatpush1.msra.mxu0 0.0
    %373 = vmatprep.subr.mxu0 0.0
    %374 = vmatpush1.msra.mxu0 0.0
    %375 = vmatprep.subr.mxu0 0.0
    %376 = vmatpush1.msra.mxu0 0.0
    %377 = vmatprep.subr.mxu0 0.0
    %378 = vmatpush1.msra.mxu0 0.0
    %379 = vmatprep.subr.mxu0 0.0
    %380 = vmatpush1.msra.mxu0 0.0
    %381 = vmatprep.subr.mxu0 0.0
    %382 = vmatpush1.msra.mxu0 0.0
    %383 = vmatprep.subr.mxu0 0.0
    %384 = vmatpush1.msra.mxu0 0.0
    %385 = vmatprep.subr.mxu0 0.0
    %386 = vmatpush1.msra.mxu0 0.0
    %387 = vmatprep.mubr.f32.mxu0 0.0
    %388 = vmatmul.mubr.f32.gmra.mrb[0].mxu0 %v321
    %v389 = vpop.f32.mrb[0].mxu0
    %v390 = vadd.f32 %v318, %v389
    %v391 = vpop.f32.mrb[0].mxu0
    %392 = vdwg.mxu0
    %vm393 = vcmask 7168
    %394 = vst.msk [vmem:[%s9] sm:$0xff] %vm393, %v390
    // Predicated region
    $region46: #{tpu_custom_call.1} parent=1 // pred_check
      _
    $region47: #{tpu_custom_call.1} parent=1 // pred_check_branch
      %396 = sbr.rel (0) target = $region49
    $region48: #{tpu_custom_call.1} parent=1 // pred_region
      _
    $region49: #{tpu_custom_call.1} parent=1 // pred_fallthru
      _
    // Predicated region
    $region50: #{tpu_custom_call.1} parent=1 // pred_check
      _
    $region51: #{tpu_custom_call.1} parent=1 // pred_check_branch
      %398 = sbr.rel (0) target = $region53
    $region52: #{tpu_custom_call.1} parent=1 // pred_region
      _
    $region53: #{tpu_custom_call.1} parent=1 // pred_fallthru
      _
    %399 = vsyncpa [#allocation4], 1
    %400 = vsyncpa [#allocation6], 1

</llo_original>
